<compile_context>
chip_gen: v6e
topology: v6e:2x2x1
jax: 0.10.0
libtpu: 0.0.40
codegen_flags: <defaults>
</compile_context>

<pallas_src>
import jax
import jax.numpy as jnp
from jax import lax
from jax.experimental import pallas as pl
from jax.experimental.pallas import tpu as pltpu


def _round_up(x, m):
    return ((x + m - 1) // m) * m


def _cab_pos_kernel(scal_ref, x_ref, dp_ref, w1_ref, b1_ref, w2_ref, b2_ref,
                    w3_ref, o_ref):
    # scal_ref (SMEM, f32[4]) = [Cd_A0_row, cab_pos_k, cab_pos_n, b3]
    # x_ref: [TB, Din] f32 tile; dp_ref / o_ref: [1, TB] lane-dense tiles.
    x = x_ref[...]                                                     # [TB, Din]

    # Linear(Din, H1) + ReLU  (f32 MXU matmul, f32 accumulate).
    h1 = jnp.dot(x, w1_ref[...], preferred_element_type=jnp.float32) + b1_ref[...]
    h1 = jnp.maximum(h1, 0.0)
    # TODO(synk): nn.Dropout is identity in eval mode; training-mode dropout not implemented.

    # Linear(H1, H2) + ReLU.
    h2 = jnp.dot(h1, w2_ref[...], preferred_element_type=jnp.float32) + b2_ref[...]
    h2 = jnp.maximum(h2, 0.0)

    # Linear(H2, 1) done as an NT matmul: w3_row [1, H2] contracted against
    # h2 [TB, H2] on their last dims -> [1, TB].  Result is lane-dense, so the
    # epilogue and the output store use full 128-lane vregs (no masked vst).
    bais = lax.dot_general(
        w3_ref[...], h2,
        dimension_numbers=(((1,), (1,)), ((), ())),
        preferred_element_type=jnp.float32,
    ) + scal_ref[3]                                                    # [1, TB]

    cd_a0 = scal_ref[0]
    k = scal_ref[1]
    n = scal_ref[2]

    dp = dp_ref[...]                                                   # [1, TB]
    base = jnp.maximum(cd_a0 * dp, 0.0)

    # m_val = sqrt(base); m_pow = m_val ** n  ==  base ** (0.5*n), computed via
    # exp/log on the EUP with an explicit guard at base == 0 so the boundary
    # matches torch: 0**n -> 0 for n>0, 1 for n==0, inf for n<0.
    half_n = 0.5 * n
    safe = jnp.where(base > 0.0, base, 1.0)
    powed = jnp.exp(half_n * jnp.log(safe))
    zero_case = jnp.where(n == 0.0, 1.0, jnp.where(n > 0.0, 0.0, jnp.inf))
    m_pow = jnp.where(base > 0.0, powed, zero_case)

    o_ref[...] = k * m_pow + bais                                      # [1, TB]


def cab_pos_forward(params, use_x, dif_pressure, *, block_b=1024):
    """Pallas forward. use_x: [B, Din] f32, dif_pressure: [B] f32 -> [B] f32."""
    B, d_in = use_x.shape
    h1_dim = params["w1"].shape[1]
    h2_dim = params["w2"].shape[1]

    # 256-aligned batch tile (full MXU M-tiles, lane-dense [1, tb] dp/out tiles).
    tb = _round_up(min(max(block_b, 256), _round_up(B, 256)), 256)
    b_pad = _round_up(B, tb)

    x = use_x.astype(jnp.float32)
    dp = dif_pressure.astype(jnp.float32)
    if b_pad != B:
        x = jnp.pad(x, ((0, b_pad - B), (0, 0)))
        dp = jnp.pad(dp, (0, b_pad - B))
    dp = dp.reshape(1, b_pad)                         # lane-dense layout

    scal = jnp.concatenate([
        params["cd_a0"], params["cab_pos_k"], params["cab_pos_n"], params["b3"]
    ]).astype(jnp.float32)

    w1 = params["w1"].astype(jnp.float32)             # [Din, H1]
    b1 = params["b1"].astype(jnp.float32)             # [1, H1]
    w2 = params["w2"].astype(jnp.float32)             # [H1, H2]
    b2 = params["b2"].astype(jnp.float32)             # [1, H2]
    w3 = params["w3"].reshape(1, h2_dim).astype(jnp.float32)   # [1, H2] row

    grid = (b_pad // tb,)

    def _const(shape):
        # Weight/bias blocks: full array, same block every grid step -> stays
        # resident in VMEM (no re-DMA across batch tiles).
        return pl.BlockSpec(shape, lambda i: (0, 0))

    flops = 2 * b_pad * (d_in * h1_dim + h1_dim * h2_dim + h2_dim)
    transcendentals = 2 * b_pad  # exp + log per element of the epilogue
    bytes_accessed = 4 * (b_pad * d_in + 2 * b_pad + d_in * h1_dim + h1_dim
                          + h1_dim * h2_dim + h2_dim + h2_dim + 4)

    out = pl.pallas_call(
        _cab_pos_kernel,
        out_shape=jax.ShapeDtypeStruct((1, b_pad), jnp.float32),
        grid=grid,
        in_specs=[
            pl.BlockSpec(memory_space=pltpu.MemorySpace.SMEM),   # scalars
            pl.BlockSpec((tb, d_in), lambda i: (i, 0)),          # use_x tile
            pl.BlockSpec((1, tb), lambda i: (0, i)),             # dp tile (lane-dense)
            _const((d_in, h1_dim)),                              # w1
            _const((1, h1_dim)),                                 # b1
            _const((h1_dim, h2_dim)),                            # w2
            _const((1, h2_dim)),                                 # b2
            _const((1, h2_dim)),                                 # w3 row
        ],
        out_specs=pl.BlockSpec((1, tb), lambda i: (0, i)),       # lane-dense out
        compiler_params=pltpu.CompilerParams(
            dimension_semantics=("parallel",),
        ),
        cost_estimate=pl.CostEstimate(
            flops=flops,
            transcendentals=transcendentals,
            bytes_accessed=bytes_accessed,
        ),
    )(scal, x, dp, w1, b1, w2, b2, w3)

    return out[0, :B]


def init_params(key, input_size=6, hidden_size=(256, 256), output_size=1):
    """Deterministic init matching the PyTorch module's shapes / init scheme.

    Weights are stored transposed vs PyTorch ([in, out]) so the kernel computes
    x @ W + b directly on the MXU; the final layer is kept as a [H2, 1] column
    (reshaped to a [1, H2] row inside the wrapper).
    """
    ks = jax.random.split(key, 6)

    def xavier_uniform(k, fan_in, fan_out):
        bound = (6.0 / (fan_in + fan_out)) ** 0.5
        return jax.random.uniform(k, (fan_in, fan_out), jnp.float32, -bound, bound)

    w1 = xavier_uniform(ks[0], input_size, hidden_size[0])
    b1 = jnp.zeros((1, hidden_size[0]), jnp.float32)
    w2 = xavier_uniform(ks[1], hidden_size[0], hidden_size[1])
    b2 = jnp.zeros((1, hidden_size[1]), jnp.float32)
    w3 = xavier_uniform(ks[2], hidden_size[1], output_size)   # [H2, 1]
    b3 = jnp.zeros((1,), jnp.float32)

    cd_a0 = jax.random.uniform(ks[3], (1,), jnp.float32)       # torch.rand(1)
    cab_pos_k = jax.random.uniform(ks[4], (1,), jnp.float32)   # torch.rand(1)
    cab_pos_n = jnp.ones((1,), jnp.float32)                    # torch.ones(1)

    return dict(w1=w1, b1=b1, w2=w2, b2=b2, w3=w3, b3=b3,
                cd_a0=cd_a0, cab_pos_k=cab_pos_k, cab_pos_n=cab_pos_n)


def _reference_forward(params, use_x, dif_pressure):
    """Plain-JAX f32 reference mirroring the PyTorch forward (eval mode)."""
    h1 = jnp.maximum(use_x @ params["w1"] + params["b1"], 0.0)
    h2 = jnp.maximum(h1 @ params["w2"] + params["b2"], 0.0)
    bais = (h2 @ params["w3"])[:, 0] + params["b3"][0]
    m_val = jnp.sqrt(jnp.maximum(params["cd_a0"][0] * dif_pressure, 0.0))
    return params["cab_pos_k"][0] * jnp.power(m_val, params["cab_pos_n"][0]) + bais


if __name__ == "__main__":
    key = jax.random.PRNGKey(0)
    k_param, k_x, k_dp = jax.random.split(key, 3)

    B, D_IN = 300, 6
    HIDDEN = (256, 256)   # small demo sizes; multiples of 128 map onto MXU tiles

    params = init_params(k_param, input_size=D_IN, hidden_size=HIDDEN, output_size=1)
    use_x = jax.random.normal(k_x, (B, D_IN), jnp.float32)
    dif_pressure = jax.random.normal(k_dp, (B,), jnp.float32)

    # block_b=256 with B=300 -> b_pad=512, a 2-step batch grid (exercises the
    # pipeline + padding/slicing); production sizes would use block_b=1024.
    out = cab_pos_forward(params, use_x, dif_pressure, block_b=256)
    out = jax.block_until_ready(out)

    ref = _reference_forward(params, use_x, dif_pressure)
    assert out.shape == (B,)
    assert bool(jnp.all(jnp.isfinite(out)))
    assert jnp.allclose(out, ref, atol=5e-3, rtol=5e-3), (out, ref)

    print("KERNEL_OK")
</pallas_src>

<mosaic_0001>
module attributes {stable_mosaic.version = 11 : i64} {
  func.func @_cab_pos_kernel(%arg0: i32, %arg1: memref<4xf32, #tpu.memory_space<smem>>, %arg2: memref<256x6xf32, #tpu.memory_space<vmem>>, %arg3: memref<1x256xf32, #tpu.memory_space<vmem>>, %arg4: memref<6x256xf32, #tpu.memory_space<vmem>>, %arg5: memref<1x256xf32, #tpu.memory_space<vmem>>, %arg6: memref<256x256xf32, #tpu.memory_space<vmem>>, %arg7: memref<1x256xf32, #tpu.memory_space<vmem>>, %arg8: memref<1x256xf32, #tpu.memory_space<vmem>>, %arg9: memref<1x256xf32, #tpu.memory_space<vmem>>) attributes {dimension_semantics = [#tpu.dimension_semantics<parallel>], iteration_bounds = array<i64: 2>, scalar_prefetch = 0 : i64, scratch_operands = 0 : i64, tpu.core_type = #tpu.core_type<tc>, window_params = [{transform_indices = @transform_0, window_bounds = array<i64: 4>}, {transform_indices = @transform_1, window_bounds = array<i64: 256, 6>}, {transform_indices = @transform_2, window_bounds = array<i64: 1, 256>}, {pipeline_mode = #tpu.pipeline_mode<synchronous>, transform_indices = @transform_3, window_bounds = array<i64: 6, 256>}, {pipeline_mode = #tpu.pipeline_mode<synchronous>, transform_indices = @transform_4, window_bounds = array<i64: 1, 256>}, {pipeline_mode = #tpu.pipeline_mode<synchronous>, transform_indices = @transform_5, window_bounds = array<i64: 256, 256>}, {pipeline_mode = #tpu.pipeline_mode<synchronous>, transform_indices = @transform_6, window_bounds = array<i64: 1, 256>}, {pipeline_mode = #tpu.pipeline_mode<synchronous>, transform_indices = @transform_7, window_bounds = array<i64: 1, 256>}, {transform_indices = @transform_8, window_bounds = array<i64: 1, 256>}]} {
    %c0 = arith.constant 0 : index
    %c0_0 = arith.constant 0 : index
    %0 = vector.load %arg2[%c0, %c0_0] : memref<256x6xf32, #tpu.memory_space<vmem>>, vector<256x6xf32>
    %c0_1 = arith.constant 0 : index
    %c0_2 = arith.constant 0 : index
    %1 = vector.load %arg4[%c0_1, %c0_2] : memref<6x256xf32, #tpu.memory_space<vmem>>, vector<6x256xf32>
    %cst = arith.constant dense<0.000000e+00> : vector<256x256xf32>
    %2 = tpu.matmul %0, %1, %cst {dimension_numbers = #tpu.dot_dimension_numbers<[1], [0], [0], [1], [0, 0, 1, 1], [], []>} : vector<256x6xf32>, vector<6x256xf32>, vector<256x256xf32> -> vector<256x256xf32>
    %c0_3 = arith.constant 0 : index
    %c0_4 = arith.constant 0 : index
    %3 = vector.load %arg5[%c0_3, %c0_4] : memref<1x256xf32, #tpu.memory_space<vmem>>, vector<1x256xf32>
    %4 = vector.broadcast %3 : vector<1x256xf32> to vector<256x256xf32>
    %5 = arith.addf %2, %4 : vector<256x256xf32>
    %cst_5 = arith.constant 0.000000e+00 : f32
    %6 = vector.broadcast %cst_5 : f32 to vector<256x256xf32>
    %7 = arith.maximumf %5, %6 : vector<256x256xf32>
    %c0_6 = arith.constant 0 : index
    %c0_7 = arith.constant 0 : index
    %8 = vector.load %arg6[%c0_6, %c0_7] : memref<256x256xf32, #tpu.memory_space<vmem>>, vector<256x256xf32>
    %cst_8 = arith.constant dense<0.000000e+00> : vector<256x256xf32>
    %9 = tpu.matmul %7, %8, %cst_8 {dimension_numbers = #tpu.dot_dimension_numbers<[1], [0], [0], [1], [0, 0, 1, 1], [], []>} : vector<256x256xf32>, vector<256x256xf32>, vector<256x256xf32> -> vector<256x256xf32>
    %c0_9 = arith.constant 0 : index
    %c0_10 = arith.constant 0 : index
    %10 = vector.load %arg7[%c0_9, %c0_10] : memref<1x256xf32, #tpu.memory_space<vmem>>, vector<1x256xf32>
    %11 = vector.broadcast %10 : vector<1x256xf32> to vector<256x256xf32>
    %12 = arith.addf %9, %11 : vector<256x256xf32>
    %cst_11 = arith.constant 0.000000e+00 : f32
    %13 = vector.broadcast %cst_11 : f32 to vector<256x256xf32>
    %14 = arith.maximumf %12, %13 : vector<256x256xf32>
    %c0_12 = arith.constant 0 : index
    %c0_13 = arith.constant 0 : index
    %15 = vector.load %arg8[%c0_12, %c0_13] : memref<1x256xf32, #tpu.memory_space<vmem>>, vector<1x256xf32>
    %cst_14 = arith.constant dense<0.000000e+00> : vector<1x256xf32>
    %16 = tpu.matmul %15, %14, %cst_14 {dimension_numbers = #tpu.dot_dimension_numbers<[1], [1], [0], [0], [0, 0, 1, 0], [], []>} : vector<1x256xf32>, vector<256x256xf32>, vector<1x256xf32> -> vector<1x256xf32>
    %c3 = arith.constant 3 : index
    %17 = memref.load %arg1[%c3] : memref<4xf32, #tpu.memory_space<smem>>
    %18 = vector.broadcast %17 : f32 to vector<1x256xf32>
    %19 = arith.addf %16, %18 : vector<1x256xf32>
    %c0_15 = arith.constant 0 : index
    %20 = memref.load %arg1[%c0_15] : memref<4xf32, #tpu.memory_space<smem>>
    %c1 = arith.constant 1 : index
    %21 = memref.load %arg1[%c1] : memref<4xf32, #tpu.memory_space<smem>>
    %c2 = arith.constant 2 : index
    %22 = memref.load %arg1[%c2] : memref<4xf32, #tpu.memory_space<smem>>
    %c0_16 = arith.constant 0 : index
    %c0_17 = arith.constant 0 : index
    %23 = vector.load %arg3[%c0_16, %c0_17] : memref<1x256xf32, #tpu.memory_space<vmem>>, vector<1x256xf32>
    %24 = vector.broadcast %20 : f32 to vector<1x256xf32>
    %25 = arith.mulf %24, %23 : vector<1x256xf32>
    %cst_18 = arith.constant 0.000000e+00 : f32
    %26 = vector.broadcast %cst_18 : f32 to vector<1x256xf32>
    %27 = arith.maximumf %25, %26 : vector<1x256xf32>
    %cst_19 = arith.constant 5.000000e-01 : f32
    %28 = arith.mulf %cst_19, %22 : f32
    %cst_20 = arith.constant 0.000000e+00 : f32
    %29 = vector.broadcast %cst_20 : f32 to vector<1x256xf32>
    %30 = arith.cmpf ogt, %27, %29 : vector<1x256xf32>
    %cst_21 = arith.constant 1.000000e+00 : f32
    %31 = vector.broadcast %cst_21 : f32 to vector<1x256xf32>
    %32 = arith.select %30, %27, %31 : vector<1x256xi1>, vector<1x256xf32>
    %33 = math.log %32 : vector<1x256xf32>
    %34 = vector.broadcast %28 : f32 to vector<1x256xf32>
    %35 = arith.mulf %34, %33 : vector<1x256xf32>
    %36 = math.exp %35 : vector<1x256xf32>
    %cst_22 = arith.constant 0.000000e+00 : f32
    %37 = arith.cmpf oeq, %22, %cst_22 : f32
    %cst_23 = arith.constant 0.000000e+00 : f32
    %38 = arith.cmpf ogt, %22, %cst_23 : f32
    %cst_24 = arith.constant 0.000000e+00 : f32
    %cst_25 = arith.constant 0x7F800000 : f32
    %39 = arith.select %38, %cst_24, %cst_25 : f32
    %cst_26 = arith.constant 1.000000e+00 : f32
    %40 = arith.select %37, %cst_26, %39 : f32
    %cst_27 = arith.constant 0.000000e+00 : f32
    %41 = vector.broadcast %cst_27 : f32 to vector<1x256xf32>
    %42 = arith.cmpf ogt, %27, %41 : vector<1x256xf32>
    %43 = vector.broadcast %40 : f32 to vector<1x256xf32>
    %44 = arith.select %42, %36, %43 : vector<1x256xi1>, vector<1x256xf32>
    %45 = vector.broadcast %21 : f32 to vector<1x256xf32>
    %46 = arith.mulf %45, %44 : vector<1x256xf32>
    %47 = arith.addf %46, %19 : vector<1x256xf32>
    %c0_28 = arith.constant 0 : index
    %c0_29 = arith.constant 0 : index
    %48 = vector.load %arg9[%c0_28, %c0_29] : memref<1x256xf32, #tpu.memory_space<vmem>>, vector<1x256xf32>
    tpu.vector_store %arg9[%c0_28, %c0_29], %47 {strides = array<i32>} : memref<1x256xf32, #tpu.memory_space<vmem>>, vector<1x256xf32>,
    return
  }
  func.func @transform_0(%arg0: i32) -> i32 {
    %c0_i32 = arith.constant 0 : i32
    %c0_i32_0 = arith.constant 0 : i32
    return %c0_i32 : i32
  }
  func.func @transform_1(%arg0: i32) -> (i32, i32) {
    %c0_i32 = arith.constant 0 : i32
    %c0_i32_0 = arith.constant 0 : i32
    return %arg0, %c0_i32 : i32, i32
  }
  func.func @transform_2(%arg0: i32) -> (i32, i32) {
    %c0_i32 = arith.constant 0 : i32
    %c0_i32_0 = arith.constant 0 : i32
    return %c0_i32, %arg0 : i32, i32
  }
  func.func @transform_3(%arg0: i32) -> (i32, i32) {
    %c0_i32 = arith.constant 0 : i32
    %c0_i32_0 = arith.constant 0 : i32
    %c0_i32_1 = arith.constant 0 : i32
    return %c0_i32, %c0_i32_0 : i32, i32
  }
  func.func @transform_4(%arg0: i32) -> (i32, i32) {
    %c0_i32 = arith.constant 0 : i32
    %c0_i32_0 = arith.constant 0 : i32
    %c0_i32_1 = arith.constant 0 : i32
    return %c0_i32, %c0_i32_0 : i32, i32
  }
  func.func @transform_5(%arg0: i32) -> (i32, i32) {
    %c0_i32 = arith.constant 0 : i32
    %c0_i32_0 = arith.constant 0 : i32
    %c0_i32_1 = arith.constant 0 : i32
    return %c0_i32, %c0_i32_0 : i32, i32
  }
  func.func @transform_6(%arg0: i32) -> (i32, i32) {
    %c0_i32 = arith.constant 0 : i32
    %c0_i32_0 = arith.constant 0 : i32
    %c0_i32_1 = arith.constant 0 : i32
    return %c0_i32, %c0_i32_0 : i32, i32
  }
  func.func @transform_7(%arg0: i32) -> (i32, i32) {
    %c0_i32 = arith.constant 0 : i32
    %c0_i32_0 = arith.constant 0 : i32
    %c0_i32_1 = arith.constant 0 : i32
    return %c0_i32, %c0_i32_0 : i32, i32
  }
  func.func @transform_8(%arg0: i32) -> (i32, i32) {
    %c0_i32 = arith.constant 0 : i32
    %c0_i32_0 = arith.constant 0 : i32
    return %c0_i32, %arg0 : i32, i32
  }
}

</mosaic_0001>

<llo_original>
// kernel: tpu_custom_call.1
$region0: #{tpu_custom_call.1}
  #allocation0 [shape = 'u32[]', space=smem, size = 0x4, offset = 0x4, fixed_abs, tag = 'smem constant byte address 0x4 - core index']
  #allocation1 [shape = 'u32[144,128]{1,0:T(1,128)}', space=vmem, size = 0x12000, scoped, tag = 'internal scratch']
  %s0 = inlined_call_operand.vmem [shape: f32[4], index: 0, kind: input, shape index: {}]
  %s1 = inlined_call_operand.vmem [shape: f32[512,6], index: 1, kind: input, shape index: {}]
  %s2 = inlined_call_operand.vmem [shape: f32[1,512], index: 2, kind: input, shape index: {}]
  %s3 = inlined_call_operand.vmem [shape: f32[6,256], index: 3, kind: input, shape index: {}]
  %s4 = inlined_call_operand.vmem [shape: f32[1,256], index: 4, kind: input, shape index: {}]
  %s5 = inlined_call_operand.vmem [shape: f32[256,256], index: 5, kind: input, shape index: {}]
  %s6 = inlined_call_operand.vmem [shape: f32[1,256], index: 6, kind: input, shape index: {}]
  %s7 = inlined_call_operand.vmem [shape: f32[1,256], index: 7, kind: input, shape index: {}]
  %s8 = inlined_call_operand.hbm [shape: f32[1,512], index: 8, kind: output, shape index: {}]
  %s9 = sld [smem:[#allocation0]]
  $region69: #{tpu_custom_call.1} parent=0
    _
  %s11 = ssub.s32 1, %s9
  %s12 = scalar_select 0, %s11, %s9
  $region1: #{tpu_custom_call.1} parent=0
    #allocation2 [shape = 'u8[512]{0}', space=smem, size = 0x200, scoped, tag = 'input window, operand 0, single buffered']
    #allocation3 [shape = 's32[2]{0}', space=sflag, size = 0x8, scoped, tag = 'scoped memory for tpu_custom_call.1']
    #allocation4 [shape = 's32[2]{0}', space=sflag, size = 0x8, scoped, tag = 'scoped memory for tpu_custom_call.1']
    #allocation5 [shape = 'u8[2048]{0}', space=vmem, size = 0x800, scoped, tag = 'output window, operand 0']
    %13 = vsyncpa [#allocation4], 0
    %14 = vsyncpa [#allocation3], 0
    %s15 = scalar_lea.sflag [#allocation3], 1
    %16 = vsyncpa %s15, 0
    loop: start=0, step=1, limit=4
    $region2: #{tpu_custom_call.1} parent=1 // loop_pre_header
      _
    $region3: #{tpu_custom_call.1} parent=1 // loop_header
      %s18 = sphi 0, %s22
      %p19 = scmp.ge.s32.totalorder %s18, 4
      %s26 = sphi 0, %s26
      %s28 = sphi 0, %s26
      %s29 = sphi 0, %s28
      %s43 = sphi 0, %s29
      %s49 = sphi 0, %s51
      %s52 = sphi 0, %s49
      %s53 = sphi 0, %s52
      %s69 = sphi 0, %s53
      %s75 = sphi 0, %s77
      %s78 = sphi 0, %s75
      %s79 = sphi 0, %s78
      %s95 = sphi 0, %s79
      %s99 = sphi 0, %s99
      %s101 = sphi 0, %s99
      %s102 = sphi 0, %s101
      %s116 = sphi 0, %s102
      %s120 = sphi 0, %s120
      %s122 = sphi 0, %s120
      %s123 = sphi 0, %s122
      %s137 = sphi 0, %s123
      %s141 = sphi 0, %s141
      %s143 = sphi 0, %s141
      %s144 = sphi 0, %s143
      %s158 = sphi 0, %s144
      %s162 = sphi 0, %s162
      %s164 = sphi 0, %s162
      %s165 = sphi 0, %s164
      %s179 = sphi 0, %s165
      %s183 = sphi 0, %s183
      %s185 = sphi 0, %s183
      %s186 = sphi 0, %s185
      %s200 = sphi 0, %s186
      %s206 = sphi 0, %s208
      %s209 = sphi 0, %s206
      %s210 = sphi 0, %s209
      %s226 = sphi 0, %s210
    $region4: #{tpu_custom_call.1} parent=1 // loop_header_branch
      %21 = sbr.rel (%p19) target = $region8
    $region5: #{tpu_custom_call.1} parent=1 // loop_body
      %s23 = ssub.s32 %s18, 1
      %s24 = ssub.s32 %s18, 2
      %s25 = sadd.s32 %s18, 1
      %s27 = sadd.s32 %s26, 1
      %p30 = scmp.eq.s32.totalorder %s18, 1
      %p31 = scmp.ne.s32.totalorder %s26, %s28
      %p32 = scmp.eq.s32.totalorder %s18, 0
      %p33 = por %p31, %p32
      %p34 = scmp.ne.s32.totalorder %s26, %s28
      %p35 = scmp.eq.s32.totalorder %s23, 1
      %p36 = por %p34, %p35
      %p37 = scmp.ne.s32.totalorder %s28, %s29
      %p38 = scmp.eq.s32.totalorder %s23, 0
      %p39 = por %p37, %p38
      %p40 = scmp.ne.s32.totalorder %s28, %s29
      %p41 = scmp.eq.s32.totalorder %s24, 1
      %p42 = por %p40, %p41
      %p44 = scmp.ne.s32.totalorder %s29, %s43
      %p45 = scmp.eq.s32.totalorder %s24, 0
      %p46 = por %p44, %p45
      %s47 = ssub.s32 %s18, %s25
      %p48 = scmp.eq.s32.totalorder %s47, 0
      %s50 = sadd.s32 %s49, 1
      %s51 = scalar_select %p48, %s49, %s50
      %p54 = pneg %p48
      %p55 = scmp.eq.s32.totalorder %s18, 1
      %p56 = por %p54, %p55
      %p57 = scmp.ne.s32.totalorder %s49, %s52
      %p58 = scmp.eq.s32.totalorder %s18, 0
      %p59 = por %p57, %p58
      %p60 = scmp.ne.s32.totalorder %s49, %s52
      %p61 = scmp.eq.s32.totalorder %s23, 1
      %p62 = por %p60, %p61
      %p63 = scmp.ne.s32.totalorder %s52, %s53
      %p64 = scmp.eq.s32.totalorder %s23, 0
      %p65 = por %p63, %p64
      %p66 = scmp.ne.s32.totalorder %s52, %s53
      %p67 = scmp.eq.s32.totalorder %s24, 1
      %p68 = por %p66, %p67
      %p70 = scmp.ne.s32.totalorder %s53, %s69
      %p71 = scmp.eq.s32.totalorder %s24, 0
      %p72 = por %p70, %p71
      %s73 = ssub.s32 %s18, %s25
      %p74 = scmp.eq.s32.totalorder %s73, 0
      %s76 = sadd.s32 %s75, 1
      %s77 = scalar_select %p74, %s75, %s76
      %p80 = pneg %p74
      %p81 = scmp.eq.s32.totalorder %s18, 1
      %p82 = por %p80, %p81
      %p83 = scmp.ne.s32.totalorder %s75, %s78
      %p84 = scmp.eq.s32.totalorder %s18, 0
      %p85 = por %p83, %p84
      %p86 = scmp.ne.s32.totalorder %s75, %s78
      %p87 = scmp.eq.s32.totalorder %s23, 1
      %p88 = por %p86, %p87
      %p89 = scmp.ne.s32.totalorder %s78, %s79
      %p90 = scmp.eq.s32.totalorder %s23, 0
      %p91 = por %p89, %p90
      %p92 = scmp.ne.s32.totalorder %s78, %s79
      %p93 = scmp.eq.s32.totalorder %s24, 1
      %p94 = por %p92, %p93
      %p96 = scmp.ne.s32.totalorder %s79, %s95
      %p97 = scmp.eq.s32.totalorder %s24, 0
      %p98 = por %p96, %p97
      %s100 = sadd.s32 %s99, 1
      %p103 = scmp.eq.s32.totalorder %s18, 1
      %p104 = scmp.ne.s32.totalorder %s99, %s101
      %p105 = scmp.eq.s32.totalorder %s18, 0
      %p106 = por %p104, %p105
      %p107 = scmp.ne.s32.totalorder %s99, %s101
      %p108 = scmp.eq.s32.totalorder %s23, 1
      %p109 = por %p107, %p108
      %p110 = scmp.ne.s32.totalorder %s101, %s102
      %p111 = scmp.eq.s32.totalorder %s23, 0
      %p112 = por %p110, %p111
      %p113 = scmp.ne.s32.totalorder %s101, %s102
      %p114 = scmp.eq.s32.totalorder %s24, 1
      %p115 = por %p113, %p114
      %p117 = scmp.ne.s32.totalorder %s102, %s116
      %p118 = scmp.eq.s32.totalorder %s24, 0
      %p119 = por %p117, %p118
      %s121 = sadd.s32 %s120, 1
      %p124 = scmp.eq.s32.totalorder %s18, 1
      %p125 = scmp.ne.s32.totalorder %s120, %s122
      %p126 = scmp.eq.s32.totalorder %s18, 0
      %p127 = por %p125, %p126
      %p128 = scmp.ne.s32.totalorder %s120, %s122
      %p129 = scmp.eq.s32.totalorder %s23, 1
      %p130 = por %p128, %p129
      %p131 = scmp.ne.s32.totalorder %s122, %s123
      %p132 = scmp.eq.s32.totalorder %s23, 0
      %p133 = por %p131, %p132
      %p134 = scmp.ne.s32.totalorder %s122, %s123
      %p135 = scmp.eq.s32.totalorder %s24, 1
      %p136 = por %p134, %p135
      %p138 = scmp.ne.s32.totalorder %s123, %s137
      %p139 = scmp.eq.s32.totalorder %s24, 0
      %p140 = por %p138, %p139
      %s142 = sadd.s32 %s141, 1
      %p145 = scmp.eq.s32.totalorder %s18, 1
      %p146 = scmp.ne.s32.totalorder %s141, %s143
      %p147 = scmp.eq.s32.totalorder %s18, 0
      %p148 = por %p146, %p147
      %p149 = scmp.ne.s32.totalorder %s141, %s143
      %p150 = scmp.eq.s32.totalorder %s23, 1
      %p151 = por %p149, %p150
      %p152 = scmp.ne.s32.totalorder %s143, %s144
      %p153 = scmp.eq.s32.totalorder %s23, 0
      %p154 = por %p152, %p153
      %p155 = scmp.ne.s32.totalorder %s143, %s144
      %p156 = scmp.eq.s32.totalorder %s24, 1
      %p157 = por %p155, %p156
      %p159 = scmp.ne.s32.totalorder %s144, %s158
      %p160 = scmp.eq.s32.totalorder %s24, 0
      %p161 = por %p159, %p160
      %s163 = sadd.s32 %s162, 1
      %p166 = scmp.eq.s32.totalorder %s18, 1
      %p167 = scmp.ne.s32.totalorder %s162, %s164
      %p168 = scmp.eq.s32.totalorder %s18, 0
      %p169 = por %p167, %p168
      %p170 = scmp.ne.s32.totalorder %s162, %s164
      %p171 = scmp.eq.s32.totalorder %s23, 1
      %p172 = por %p170, %p171
      %p173 = scmp.ne.s32.totalorder %s164, %s165
      %p174 = scmp.eq.s32.totalorder %s23, 0
      %p175 = por %p173, %p174
      %p176 = scmp.ne.s32.totalorder %s164, %s165
      %p177 = scmp.eq.s32.totalorder %s24, 1
      %p178 = por %p176, %p177
      %p180 = scmp.ne.s32.totalorder %s165, %s179
      %p181 = scmp.eq.s32.totalorder %s24, 0
      %p182 = por %p180, %p181
      %s184 = sadd.s32 %s183, 1
      %p187 = scmp.eq.s32.totalorder %s18, 1
      %p188 = scmp.ne.s32.totalorder %s183, %s185
      %p189 = scmp.eq.s32.totalorder %s18, 0
      %p190 = por %p188, %p189
      %p191 = scmp.ne.s32.totalorder %s183, %s185
      %p192 = scmp.eq.s32.totalorder %s23, 1
      %p193 = por %p191, %p192
      %p194 = scmp.ne.s32.totalorder %s185, %s186
      %p195 = scmp.eq.s32.totalorder %s23, 0
      %p196 = por %p194, %p195
      %p197 = scmp.ne.s32.totalorder %s185, %s186
      %p198 = scmp.eq.s32.totalorder %s24, 1
      %p199 = por %p197, %p198
      %p201 = scmp.ne.s32.totalorder %s186, %s200
      %p202 = scmp.eq.s32.totalorder %s24, 0
      %p203 = por %p201, %p202
      %s204 = ssub.s32 %s18, %s25
      %p205 = scmp.eq.s32.totalorder %s204, 0
      %s207 = sadd.s32 %s206, 1
      %s208 = scalar_select %p205, %s206, %s207
      %p211 = pneg %p205
      %p212 = scmp.eq.s32.totalorder %s18, 1
      %p213 = por %p211, %p212
      %p214 = scmp.ne.s32.totalorder %s206, %s209
      %p215 = scmp.eq.s32.totalorder %s18, 0
      %p216 = por %p214, %p215
      %p217 = scmp.ne.s32.totalorder %s206, %s209
      %p218 = scmp.eq.s32.totalorder %s23, 1
      %p219 = por %p217, %p218
      %p220 = scmp.ne.s32.totalorder %s209, %s210
      %p221 = scmp.eq.s32.totalorder %s23, 0
      %p222 = por %p220, %p221
      %p223 = scmp.ne.s32.totalorder %s209, %s210
      %p224 = scmp.eq.s32.totalorder %s24, 1
      %p225 = por %p223, %p224
      %p227 = scmp.ne.s32.totalorder %s210, %s226
      %p228 = scmp.eq.s32.totalorder %s24, 0
      %p229 = por %p227, %p228
      %p230 = scmp.le.s32.totalorder 1, %s18
      %p231 = scmp.lt.s32.totalorder %s18, 3
      %p232 = pnand %p230, %p231
      %p233 = pneg %p232
      // Predicated region
      $region9: #{tpu_custom_call.1} parent=5 // pred_check
        _
      $region10: #{tpu_custom_call.1} parent=5 // pred_check_branch
        %235 = sbr.rel (%p232) target = $region12
      $region11: #{tpu_custom_call.1} parent=5 // pred_region
        %s236 = ssub.s32 %s18, 1
        // Predicated region
        $region13: #{tpu_custom_call.1} parent=11 // pred_check
          %p237 = pneg %p39
        $region14: #{tpu_custom_call.1} parent=11 // pred_check_branch
          %239 = sbr.rel (%p237) target = $region16
        $region15: #{tpu_custom_call.1} parent=11 // pred_region
          %s241 = ssub.s32 16, 16
          %242 = vsyncadd [#allocation4], %s241
          %s244 = sshll.u32 %s0, 4
          %s245 = int_to_ptr.vmem [resolvable:$true] %s244
          %247 = dma.vmem_to_smem %s245, 16, [#allocation2], [#allocation4]
        $region16: #{tpu_custom_call.1} parent=11 // pred_fallthru
          _
        // Predicated region
        $region17: #{tpu_custom_call.1} parent=11 // pred_check
          %p248 = pneg %p112
        $region18: #{tpu_custom_call.1} parent=11 // pred_check_branch
          %250 = sbr.rel (%p248) target = $region20
        $region19: #{tpu_custom_call.1} parent=11 // pred_region
          _
        $region20: #{tpu_custom_call.1} parent=11 // pred_fallthru
          _
        // Predicated region
        $region21: #{tpu_custom_call.1} parent=11 // pred_check
          %p251 = pneg %p133
        $region22: #{tpu_custom_call.1} parent=11 // pred_check_branch
          %253 = sbr.rel (%p251) target = $region24
        $region23: #{tpu_custom_call.1} parent=11 // pred_region
          _
        $region24: #{tpu_custom_call.1} parent=11 // pred_fallthru
          _
        // Predicated region
        $region25: #{tpu_custom_call.1} parent=11 // pred_check
          %p254 = pneg %p154
        $region26: #{tpu_custom_call.1} parent=11 // pred_check_branch
          %256 = sbr.rel (%p254) target = $region28
        $region27: #{tpu_custom_call.1} parent=11 // pred_region
          _
        $region28: #{tpu_custom_call.1} parent=11 // pred_fallthru
          _
        // Predicated region
        $region29: #{tpu_custom_call.1} parent=11 // pred_check
          %p257 = pneg %p175
        $region30: #{tpu_custom_call.1} parent=11 // pred_check_branch
          %259 = sbr.rel (%p257) target = $region32
        $region31: #{tpu_custom_call.1} parent=11 // pred_region
          _
        $region32: #{tpu_custom_call.1} parent=11 // pred_fallthru
          _
        // Predicated region
        $region33: #{tpu_custom_call.1} parent=11 // pred_check
          %p260 = pneg %p196
        $region34: #{tpu_custom_call.1} parent=11 // pred_check_branch
          %262 = sbr.rel (%p260) target = $region36
        $region35: #{tpu_custom_call.1} parent=11 // pred_region
          _
        $region36: #{tpu_custom_call.1} parent=11 // pred_fallthru
          _
      $region12: #{tpu_custom_call.1} parent=5 // pred_fallthru
        _
      %p263 = scmp.lt.s32.totalorder %s18, 2
      // Predicated region
      $region37: #{tpu_custom_call.1} parent=5 // pred_check
        %p264 = pneg %p263
      $region38: #{tpu_custom_call.1} parent=5 // pred_check_branch
        %266 = sbr.rel (%p264) target = $region40
      $region39: #{tpu_custom_call.1} parent=5 // pred_region
        // Predicated region
        $region41: #{tpu_custom_call.1} parent=39 // pred_check
          %p267 = pneg %p59
        $region42: #{tpu_custom_call.1} parent=39 // pred_check_branch
          %269 = sbr.rel (%p267) target = $region44
        $region43: #{tpu_custom_call.1} parent=39 // pred_region
          %s270 = smul.u32 32, %s18
          %p271 = scmp.lt.s32.totalorder %s270, 63
          %s272 = scalar_select %p271, %s270, 63
          %s273 = smul.addr %s272, 8
          %s274 = scalar_lea.vmem %s1, %s273
          %s275 = smul.u32 32, %s18
        $region44: #{tpu_custom_call.1} parent=39 // pred_fallthru
          _
        // Predicated region
        $region45: #{tpu_custom_call.1} parent=39 // pred_check
          %p276 = pneg %p85
        $region46: #{tpu_custom_call.1} parent=39 // pred_check_branch
          %278 = sbr.rel (%p276) target = $region48
        $region47: #{tpu_custom_call.1} parent=39 // pred_region
          %s279 = smul.u32 2, %s18
          %p280 = scmp.lt.s32.totalorder %s279, 3
          %s281 = scalar_select %p280, %s279, 3
          %s282 = scalar_lea.vmem %s2, %s281
          %s283 = smul.u32 2, %s18
        $region48: #{tpu_custom_call.1} parent=39 // pred_fallthru
          _
      $region40: #{tpu_custom_call.1} parent=5 // pred_fallthru
        _
      %p284 = scmp.le.s32.totalorder 1, %s18
      %p285 = scmp.lt.s32.totalorder %s18, 3
      %p286 = pnand %p284, %p285
      %p287 = pneg %p286
      // Predicated region
      $region49: #{tpu_custom_call.1} parent=5 // pred_check
        _
      $region50: #{tpu_custom_call.1} parent=5 // pred_check_branch
        %289 = sbr.rel (%p286) target = $region52
      $region51: #{tpu_custom_call.1} parent=5 // pred_region
        %s290 = ssub.s32 %s18, 1
        // Predicated region
        $region53: #{tpu_custom_call.1} parent=51 // pred_check
          %p291 = pneg %p39
        $region54: #{tpu_custom_call.1} parent=51 // pred_check_branch
          %293 = sbr.rel (%p291) target = $region56
        $region55: #{tpu_custom_call.1} parent=51 // pred_region
          %294 = dma.done [#allocation4], 16
        $region56: #{tpu_custom_call.1} parent=51 // pred_fallthru
          _
        %295 = sfence
        %p296 = pneg %p39
        %p297 = pneg %p36
        %s298 = smul.u32 32, %s23
        %p299 = scmp.lt.s32.totalorder %s298, 63
        %s300 = scalar_select %p299, %s298, 63
        %s301 = smul.addr %s300, 8
        %s302 = scalar_lea.vmem %s1, %s301
        %p303 = pneg %p65
        %p304 = pneg %p62
        %s305 = smul.u32 2, %s23
        %p306 = scmp.lt.s32.totalorder %s305, 3
        %s307 = scalar_select %p306, %s305, 3
        %s308 = scalar_lea.vmem %s2, %s307
        %p309 = pneg %p91
        %p310 = pneg %p88
        %p311 = pneg %p112
        %p312 = pneg %p109
        %p313 = pneg %p133
        %p314 = pneg %p130
        %p315 = pneg %p154
        %p316 = pneg %p151
        %p317 = pneg %p175
        %p318 = pneg %p172
        %p319 = pneg %p196
        %p320 = pneg %p193
        %p321 = pneg %p222
        %p322 = pneg %p219
        %s323 = sand.u32 %s209, 1
        %s324 = scalar_lea.sflag [#allocation3], %s323
        %s325 = sand.u32 %s209, 1
        %s326 = smul.addr %s325, 2
        %s327 = scalar_lea.vmem [#allocation5], %s326
        %s328 = smul.u32 32, %s23
        %p329 = scmp.lt.s32.totalorder %s328, 63
        %s330 = scalar_select %p329, %s328, 63
        %s331 = smul.addr %s330, 8
        %s332 = scalar_lea.vmem %s1, %s331
        %s333 = smul.u32 32, %s23
        %s334 = smul.u32 2, %s23
        %p335 = scmp.lt.s32.totalorder %s334, 3
        %s336 = scalar_select %p335, %s334, 3
        %s337 = scalar_lea.vmem %s2, %s336
        %s338 = smul.u32 2, %s23
        %s339 = smul.u32 2, %s23
        %v340 = vld [vmem:[%s332] sm:$0xff]
        %v341 = vld [vmem:[%s332 + $0x8] sm:$0xff]
        %v342 = vld [vmem:[%s332 + $0x10] sm:$0xff]
        %v343 = vld [vmem:[%s332 + $0x18] sm:$0xff]
        %v344 = vld [vmem:[%s332 + $0x20] sm:$0xff]
        %v345 = vld [vmem:[%s332 + $0x28] sm:$0xff]
        %v346 = vld [vmem:[%s332 + $0x30] sm:$0xff]
        %v347 = vld [vmem:[%s332 + $0x38] sm:$0xff]
        %v348 = vld [vmem:[%s332 + $0x40] sm:$0xff]
        %v349 = vld [vmem:[%s332 + $0x48] sm:$0xff]
        %v350 = vld [vmem:[%s332 + $0x50] sm:$0xff]
        %v351 = vld [vmem:[%s332 + $0x58] sm:$0xff]
        %v352 = vld [vmem:[%s332 + $0x60] sm:$0xff]
        %v353 = vld [vmem:[%s332 + $0x68] sm:$0xff]
        %v354 = vld [vmem:[%s332 + $0x70] sm:$0xff]
        %v355 = vld [vmem:[%s332 + $0x78] sm:$0xff]
        %v356 = vld [vmem:[%s332 + $0x80] sm:$0xff]
        %v357 = vld [vmem:[%s332 + $0x88] sm:$0xff]
        %v358 = vld [vmem:[%s332 + $0x90] sm:$0xff]
        %v359 = vld [vmem:[%s332 + $0x98] sm:$0xff]
        %v360 = vld [vmem:[%s332 + $0xa0] sm:$0xff]
        %v361 = vld [vmem:[%s332 + $0xa8] sm:$0xff]
        %v362 = vld [vmem:[%s332 + $0xb0] sm:$0xff]
        %v363 = vld [vmem:[%s332 + $0xb8] sm:$0xff]
        %v364 = vld [vmem:[%s332 + $0xc0] sm:$0xff]
        %v365 = vld [vmem:[%s332 + $0xc8] sm:$0xff]
        %v366 = vld [vmem:[%s332 + $0xd0] sm:$0xff]
        %v367 = vld [vmem:[%s332 + $0xd8] sm:$0xff]
        %v368 = vld [vmem:[%s332 + $0xe0] sm:$0xff]
        %v369 = vld [vmem:[%s332 + $0xe8] sm:$0xff]
        %v370 = vld [vmem:[%s332 + $0xf0] sm:$0xff]
        %v371 = vld [vmem:[%s332 + $0xf8] sm:$0xff]
        %v372 = vld [vmem:[%s3] sm:$0x3f]
        %v373 = vld [vmem:[%s3 + $0x8] sm:$0x3f]
        %v374 = vld [vmem:[%s4] sm:$0x3]
        %v376 = vlaneseq
        %v377 = vshrl.u32 %v376, 7
        %v378 = vsub.s32 0, %v377
        %v379 = vrot.slane %v374, %v378
        %v380 = vlaneseq
        %v381 = vshrl.u32 %v380, 7
        %v382 = vsub.s32 1, %v381
        %v383 = vrot.slane %v374, %v382
        %vm386 = vcmask 48128
        %v388 = vsel %vm386, %v340, 0
        %v391 = vsel %vm386, %v341, 0
        %v394 = vsel %vm386, %v342, 0
        %v397 = vsel %vm386, %v343, 0
        %v400 = vsel %vm386, %v344, 0
        %v403 = vsel %vm386, %v345, 0
        %v406 = vsel %vm386, %v346, 0
        %v409 = vsel %vm386, %v347, 0
        %v412 = vsel %vm386, %v348, 0
        %v415 = vsel %vm386, %v349, 0
        %v418 = vsel %vm386, %v350, 0
        %v421 = vsel %vm386, %v351, 0
        %v424 = vsel %vm386, %v352, 0
        %v427 = vsel %vm386, %v353, 0
        %v430 = vsel %vm386, %v354, 0
        %v433 = vsel %vm386, %v355, 0
        %v436 = vsel %vm386, %v356, 0
        %v439 = vsel %vm386, %v357, 0
        %v442 = vsel %vm386, %v358, 0
        %v445 = vsel %vm386, %v359, 0
        %v448 = vsel %vm386, %v360, 0
        %v451 = vsel %vm386, %v361, 0
        %v454 = vsel %vm386, %v362, 0
        %v457 = vsel %vm386, %v363, 0
        %v460 = vsel %vm386, %v364, 0
        %v463 = vsel %vm386, %v365, 0
        %v466 = vsel %vm386, %v366, 0
        %v469 = vsel %vm386, %v367, 0
        %v472 = vsel %vm386, %v368, 0
        %v475 = vsel %vm386, %v369, 0
        %v478 = vsel %vm386, %v370, 0
        %v481 = vsel %vm386, %v371, 0
        %vm483 = vcmask 1045504
        %v485 = vsel %vm483, %v372, 0
        %v488 = vsel %vm483, %v373, 0
        %490 = vmatprep.subr.mxu0 0.0
        %491 = vmatpush1.msra.mxu0 0.0
        %492 = vmatprep.subr.mxu0 0.0
        %493 = vmatpush1.msra.mxu0 0.0
        %494 = vmatprep.subr.mxu0 0.0
        %495 = vmatpush1.msra.mxu0 0.0
        %496 = vmatprep.subr.mxu0 0.0
        %497 = vmatpush1.msra.mxu0 0.0
        %498 = vmatprep.subr.mxu0 0.0
        %499 = vmatpush1.msra.mxu0 0.0
        %500 = vmatprep.subr.mxu0 0.0
        %501 = vmatpush1.msra.mxu0 0.0
        %502 = vmatprep.subr.mxu0 0.0
        %503 = vmatpush1.msra.mxu0 0.0
        %504 = vmatprep.subr.mxu0 0.0
        %505 = vmatpush1.msra.mxu0 0.0
        %506 = vmatprep.subr.mxu0 0.0
        %507 = vmatpush1.msra.mxu0 0.0
        %508 = vmatprep.subr.mxu0 0.0
        %509 = vmatpush1.msra.mxu0 0.0
        %510 = vmatprep.subr.mxu0 0.0
        %511 = vmatpush1.msra.mxu0 0.0
        %512 = vmatprep.subr.mxu0 0.0
        %513 = vmatpush1.msra.mxu0 0.0
        %514 = vmatprep.subr.mxu0 0.0
        %515 = vmatpush1.msra.mxu0 0.0
        %516 = vmatprep.subr.mxu0 0.0
        %517 = vmatpush1.msra.mxu0 0.0
        %518 = vmatprep.subr.mxu0 0.0
        %519 = vmatpush1.msra.mxu0 0.0
        %520 = vmatprep.subr.mxu0 %v488
        %521 = vmatpush1.msra.mxu0 %v485
        %522 = vmatprep.subr.mxu0 0.0
        %523 = vmatpush2.msra.mxu0 0.0
        %524 = vmatprep.subr.mxu0 0.0
        %525 = vmatpush2.msra.mxu0 0.0
        %526 = vmatprep.subr.mxu0 0.0
        %527 = vmatpush2.msra.mxu0 0.0
        %528 = vmatprep.subr.mxu0 0.0
        %529 = vmatpush2.msra.mxu0 0.0
        %530 = vmatprep.subr.mxu0 0.0
        %531 = vmatpush2.msra.mxu0 0.0
        %532 = vmatprep.subr.mxu0 0.0
        %533 = vmatpush2.msra.mxu0 0.0
        %534 = vmatprep.subr.mxu0 0.0
        %535 = vmatpush2.msra.mxu0 0.0
        %536 = vmatprep.subr.mxu0 0.0
        %537 = vmatpush2.msra.mxu0 0.0
        %538 = vmatprep.subr.mxu0 0.0
        %539 = vmatpush2.msra.mxu0 0.0
        %540 = vmatprep.subr.mxu0 0.0
        %541 = vmatpush2.msra.mxu0 0.0
        %542 = vmatprep.subr.mxu0 0.0
        %543 = vmatpush2.msra.mxu0 0.0
        %544 = vmatprep.subr.mxu0 0.0
        %545 = vmatpush2.msra.mxu0 0.0
        %546 = vmatprep.subr.mxu0 0.0
        %547 = vmatpush2.msra.mxu0 0.0
        %548 = vmatprep.subr.mxu0 0.0
        %549 = vmatpush2.msra.mxu0 0.0
        %550 = vmatprep.subr.mxu0 0.0
        %551 = vmatpush2.msra.mxu0 0.0
        %552 = vmatprep.subr.mxu0 0.0
        %553 = vmatpush2.msra.mxu0 0.0
        %554 = vmatprep.mubr.f32.mxu0 0.0
        %555 = vmatmul.mubr.f32.gmra.mxu0 %v388
        %v556 = vpop.f32.mrf.mxu0
        %v557 = vadd.f32 %v379, %v556
        %v558 = vpop.f32.mrf.mxu0
        %v559 = vadd.f32 %v383, %v558
        %560 = vmatprep.mubr.f32.mxu0 0.0
        %561 = vmatmul.mubr.f32.gmra.mxu0 %v391
        %v562 = vpop.f32.mrf.mxu0
        %v563 = vadd.f32 %v379, %v562
        %v564 = vpop.f32.mrf.mxu0
        %v565 = vadd.f32 %v383, %v564
        %566 = vmatprep.mubr.f32.mxu0 0.0
        %567 = vmatmul.mubr.f32.gmra.mxu0 %v394
        %v568 = vpop.f32.mrf.mxu0
        %v569 = vadd.f32 %v379, %v568
        %v570 = vpop.f32.mrf.mxu0
        %v571 = vadd.f32 %v383, %v570
        %572 = vmatprep.mubr.f32.mxu0 0.0
        %573 = vmatmul.mubr.f32.gmra.mxu0 %v397
        %v574 = vpop.f32.mrf.mxu0
        %v575 = vadd.f32 %v379, %v574
        %v576 = vpop.f32.mrf.mxu0
        %v577 = vadd.f32 %v383, %v576
        %578 = vmatprep.mubr.f32.mxu0 0.0
        %579 = vmatmul.mubr.f32.gmra.mxu0 %v400
        %v580 = vpop.f32.mrf.mxu0
        %v581 = vadd.f32 %v379, %v580
        %v582 = vpop.f32.mrf.mxu0
        %v583 = vadd.f32 %v383, %v582
        %584 = vmatprep.mubr.f32.mxu0 0.0
        %585 = vmatmul.mubr.f32.gmra.mxu0 %v403
        %v586 = vpop.f32.mrf.mxu0
        %v587 = vadd.f32 %v379, %v586
        %v588 = vpop.f32.mrf.mxu0
        %v589 = vadd.f32 %v383, %v588
        %590 = vmatprep.mubr.f32.mxu0 0.0
        %591 = vmatmul.mubr.f32.gmra.mxu0 %v406
        %v592 = vpop.f32.mrf.mxu0
        %v593 = vadd.f32 %v379, %v592
        %v594 = vpop.f32.mrf.mxu0
        %v595 = vadd.f32 %v383, %v594
        %596 = vmatprep.mubr.f32.mxu0 0.0
        %597 = vmatmul.mubr.f32.gmra.mxu0 %v409
        %v598 = vpop.f32.mrf.mxu0
        %v599 = vadd.f32 %v379, %v598
        %v600 = vpop.f32.mrf.mxu0
        %v601 = vadd.f32 %v383, %v600
        %602 = vmatprep.mubr.f32.mxu0 0.0
        %603 = vmatmul.mubr.f32.gmra.mxu0 %v412
        %v604 = vpop.f32.mrf.mxu0
        %v605 = vadd.f32 %v379, %v604
        %v606 = vpop.f32.mrf.mxu0
        %v607 = vadd.f32 %v383, %v606
        %608 = vmatprep.mubr.f32.mxu0 0.0
        %609 = vmatmul.mubr.f32.gmra.mxu0 %v415
        %v610 = vpop.f32.mrf.mxu0
        %v611 = vadd.f32 %v379, %v610
        %v612 = vpop.f32.mrf.mxu0
        %v613 = vadd.f32 %v383, %v612
        %614 = vmatprep.mubr.f32.mxu0 0.0
        %615 = vmatmul.mubr.f32.gmra.mxu0 %v418
        %v616 = vpop.f32.mrf.mxu0
        %v617 = vadd.f32 %v379, %v616
        %v618 = vpop.f32.mrf.mxu0
        %v619 = vadd.f32 %v383, %v618
        %620 = vmatprep.mubr.f32.mxu0 0.0
        %621 = vmatmul.mubr.f32.gmra.mxu0 %v421
        %v622 = vpop.f32.mrf.mxu0
        %v623 = vadd.f32 %v379, %v622
        %v624 = vpop.f32.mrf.mxu0
        %v625 = vadd.f32 %v383, %v624
        %626 = vmatprep.mubr.f32.mxu0 0.0
        %627 = vmatmul.mubr.f32.gmra.mxu0 %v424
        %v628 = vpop.f32.mrf.mxu0
        %v629 = vadd.f32 %v379, %v628
        %v630 = vpop.f32.mrf.mxu0
        %v631 = vadd.f32 %v383, %v630
        %632 = vmatprep.mubr.f32.mxu0 0.0
        %633 = vmatmul.mubr.f32.gmra.mxu0 %v427
        %v634 = vpop.f32.mrf.mxu0
        %v635 = vadd.f32 %v379, %v634
        %v636 = vpop.f32.mrf.mxu0
        %v637 = vadd.f32 %v383, %v636
        %638 = vmatprep.mubr.f32.mxu0 0.0
        %639 = vmatmul.mubr.f32.gmra.mxu0 %v430
        %v640 = vpop.f32.mrf.mxu0
        %v641 = vadd.f32 %v379, %v640
        %v642 = vpop.f32.mrf.mxu0
        %v643 = vadd.f32 %v383, %v642
        %644 = vmatprep.mubr.f32.mxu0 0.0
        %645 = vmatmul.mubr.f32.gmra.mxu0 %v433
        %v646 = vpop.f32.mrf.mxu0
        %v647 = vadd.f32 %v379, %v646
        %v648 = vpop.f32.mrf.mxu0
        %v649 = vadd.f32 %v383, %v648
        %650 = vmatprep.mubr.f32.mxu0 0.0
        %651 = vmatmul.mubr.f32.gmra.mxu0 %v436
        %v652 = vpop.f32.mrf.mxu0
        %v653 = vadd.f32 %v379, %v652
        %v654 = vpop.f32.mrf.mxu0
        %v655 = vadd.f32 %v383, %v654
        %656 = vmatprep.mubr.f32.mxu0 0.0
        %657 = vmatmul.mubr.f32.gmra.mxu0 %v439
        %v658 = vpop.f32.mrf.mxu0
        %v659 = vadd.f32 %v379, %v658
        %v660 = vpop.f32.mrf.mxu0
        %v661 = vadd.f32 %v383, %v660
        %662 = vmatprep.mubr.f32.mxu0 0.0
        %663 = vmatmul.mubr.f32.gmra.mxu0 %v442
        %v664 = vpop.f32.mrf.mxu0
        %v665 = vadd.f32 %v379, %v664
        %v666 = vpop.f32.mrf.mxu0
        %v667 = vadd.f32 %v383, %v666
        %668 = vmatprep.mubr.f32.mxu0 0.0
        %669 = vmatmul.mubr.f32.gmra.mxu0 %v445
        %v670 = vpop.f32.mrf.mxu0
        %v671 = vadd.f32 %v379, %v670
        %v672 = vpop.f32.mrf.mxu0
        %v673 = vadd.f32 %v383, %v672
        %674 = vmatprep.mubr.f32.mxu0 0.0
        %675 = vmatmul.mubr.f32.gmra.mxu0 %v448
        %v676 = vpop.f32.mrf.mxu0
        %v677 = vadd.f32 %v379, %v676
        %v678 = vpop.f32.mrf.mxu0
        %v679 = vadd.f32 %v383, %v678
        %680 = vmatprep.mubr.f32.mxu0 0.0
        %681 = vmatmul.mubr.f32.gmra.mxu0 %v451
        %v682 = vpop.f32.mrf.mxu0
        %v683 = vadd.f32 %v379, %v682
        %v684 = vpop.f32.mrf.mxu0
        %v685 = vadd.f32 %v383, %v684
        %686 = vmatprep.mubr.f32.mxu0 0.0
        %687 = vmatmul.mubr.f32.gmra.mxu0 %v454
        %v688 = vpop.f32.mrf.mxu0
        %v689 = vadd.f32 %v379, %v688
        %v690 = vpop.f32.mrf.mxu0
        %v691 = vadd.f32 %v383, %v690
        %692 = vmatprep.mubr.f32.mxu0 0.0
        %693 = vmatmul.mubr.f32.gmra.mxu0 %v457
        %v694 = vpop.f32.mrf.mxu0
        %v695 = vadd.f32 %v379, %v694
        %v696 = vpop.f32.mrf.mxu0
        %v697 = vadd.f32 %v383, %v696
        %698 = vmatprep.mubr.f32.mxu0 0.0
        %699 = vmatmul.mubr.f32.gmra.mxu0 %v460
        %v700 = vpop.f32.mrf.mxu0
        %v701 = vadd.f32 %v379, %v700
        %v702 = vpop.f32.mrf.mxu0
        %v703 = vadd.f32 %v383, %v702
        %704 = vmatprep.mubr.f32.mxu0 0.0
        %705 = vmatmul.mubr.f32.gmra.mxu0 %v463
        %v706 = vpop.f32.mrf.mxu0
        %v707 = vadd.f32 %v379, %v706
        %v708 = vpop.f32.mrf.mxu0
        %v709 = vadd.f32 %v383, %v708
        %710 = vmatprep.mubr.f32.mxu0 0.0
        %711 = vmatmul.mubr.f32.gmra.mxu0 %v466
        %v712 = vpop.f32.mrf.mxu0
        %v713 = vadd.f32 %v379, %v712
        %v714 = vpop.f32.mrf.mxu0
        %v715 = vadd.f32 %v383, %v714
        %716 = vmatprep.mubr.f32.mxu0 0.0
        %717 = vmatmul.mubr.f32.gmra.mxu0 %v469
        %v718 = vpop.f32.mrf.mxu0
        %v719 = vadd.f32 %v379, %v718
        %v720 = vpop.f32.mrf.mxu0
        %v721 = vadd.f32 %v383, %v720
        %722 = vmatprep.mubr.f32.mxu0 0.0
        %723 = vmatmul.mubr.f32.gmra.mxu0 %v472
        %v724 = vpop.f32.mrf.mxu0
        %v725 = vadd.f32 %v379, %v724
        %v726 = vpop.f32.mrf.mxu0
        %v727 = vadd.f32 %v383, %v726
        %728 = vmatprep.mubr.f32.mxu0 0.0
        %729 = vmatmul.mubr.f32.gmra.mxu0 %v475
        %v730 = vpop.f32.mrf.mxu0
        %v731 = vadd.f32 %v379, %v730
        %v732 = vpop.f32.mrf.mxu0
        %v733 = vadd.f32 %v383, %v732
        %734 = vmatprep.mubr.f32.mxu0 0.0
        %735 = vmatmul.mubr.f32.gmra.mxu0 %v478
        %v736 = vpop.f32.mrf.mxu0
        %v737 = vadd.f32 %v379, %v736
        %v738 = vpop.f32.mrf.mxu0
        %v739 = vadd.f32 %v383, %v738
        %740 = vmatprep.mubr.f32.mxu0 0.0
        %741 = vmatmul.mubr.f32.gmra.mxu0 %v481
        %v742 = vpop.f32.mrf.mxu0
        %v743 = vadd.f32 %v379, %v742
        %v744 = vpop.f32.mrf.mxu0
        %v745 = vadd.f32 %v383, %v744
        %746 = vdwg.mxu0
        %v747 = vmax.f32 %v557, 0.0
        %v748 = vmax.f32 %v559, 0.0
        %v749 = vmax.f32 %v563, 0.0
        %v750 = vmax.f32 %v565, 0.0
        %v751 = vmax.f32 %v569, 0.0
        %v752 = vmax.f32 %v571, 0.0
        %v753 = vmax.f32 %v575, 0.0
        %v754 = vmax.f32 %v577, 0.0
        %v755 = vmax.f32 %v581, 0.0
        %v756 = vmax.f32 %v583, 0.0
        %v757 = vmax.f32 %v587, 0.0
        %v758 = vmax.f32 %v589, 0.0
        %v759 = vmax.f32 %v593, 0.0
        %v760 = vmax.f32 %v595, 0.0
        %v761 = vmax.f32 %v599, 0.0
        %v762 = vmax.f32 %v601, 0.0
        %v763 = vmax.f32 %v605, 0.0
        %v764 = vmax.f32 %v607, 0.0
        %v765 = vmax.f32 %v611, 0.0
        %v766 = vmax.f32 %v613, 0.0
        %v767 = vmax.f32 %v617, 0.0
        %v768 = vmax.f32 %v619, 0.0
        %v769 = vmax.f32 %v623, 0.0
        %v770 = vmax.f32 %v625, 0.0
        %v771 = vmax.f32 %v629, 0.0
        %v772 = vmax.f32 %v631, 0.0
        %v773 = vmax.f32 %v635, 0.0
        %v774 = vmax.f32 %v637, 0.0
        %v775 = vmax.f32 %v641, 0.0
        %v776 = vmax.f32 %v643, 0.0
        %v777 = vmax.f32 %v647, 0.0
        %v778 = vmax.f32 %v649, 0.0
        %v779 = vmax.f32 %v653, 0.0
        %v780 = vmax.f32 %v655, 0.0
        %v781 = vmax.f32 %v659, 0.0
        %v782 = vmax.f32 %v661, 0.0
        %v783 = vmax.f32 %v665, 0.0
        %v784 = vmax.f32 %v667, 0.0
        %v785 = vmax.f32 %v671, 0.0
        %v786 = vmax.f32 %v673, 0.0
        %v787 = vmax.f32 %v677, 0.0
        %v788 = vmax.f32 %v679, 0.0
        %v789 = vmax.f32 %v683, 0.0
        %v790 = vmax.f32 %v685, 0.0
        %v791 = vmax.f32 %v689, 0.0
        %v792 = vmax.f32 %v691, 0.0
        %v793 = vmax.f32 %v695, 0.0
        %v794 = vmax.f32 %v697, 0.0
        %v795 = vmax.f32 %v701, 0.0
        %v796 = vmax.f32 %v703, 0.0
        %v797 = vmax.f32 %v707, 0.0
        %v798 = vmax.f32 %v709, 0.0
        %v799 = vmax.f32 %v713, 0.0
        %v800 = vmax.f32 %v715, 0.0
        %v801 = vmax.f32 %v719, 0.0
        %v802 = vmax.f32 %v721, 0.0
        %v803 = vmax.f32 %v725, 0.0
        %v804 = vmax.f32 %v727, 0.0
        %v805 = vmax.f32 %v731, 0.0
        %v806 = vmax.f32 %v733, 0.0
        %v807 = vmax.f32 %v737, 0.0
        %v808 = vmax.f32 %v739, 0.0
        %v809 = vmax.f32 %v743, 0.0
        %v810 = vmax.f32 %v745, 0.0
        %v811 = vld [vmem:[%s5] sm:$0xff]
        %v812 = vld [vmem:[%s5 + $0x8] sm:$0xff]
        %v813 = vld [vmem:[%s5 + $0x10] sm:$0xff]
        %v814 = vld [vmem:[%s5 + $0x18] sm:$0xff]
        %v815 = vld [vmem:[%s5 + $0x20] sm:$0xff]
        %v816 = vld [vmem:[%s5 + $0x28] sm:$0xff]
        %v817 = vld [vmem:[%s5 + $0x30] sm:$0xff]
        %v818 = vld [vmem:[%s5 + $0x38] sm:$0xff]
        %v819 = vld [vmem:[%s5 + $0x40] sm:$0xff]
        %v820 = vld [vmem:[%s5 + $0x48] sm:$0xff]
        %v821 = vld [vmem:[%s5 + $0x50] sm:$0xff]
        %v822 = vld [vmem:[%s5 + $0x58] sm:$0xff]
        %v823 = vld [vmem:[%s5 + $0x60] sm:$0xff]
        %v824 = vld [vmem:[%s5 + $0x68] sm:$0xff]
        %v825 = vld [vmem:[%s5 + $0x70] sm:$0xff]
        %v826 = vld [vmem:[%s5 + $0x78] sm:$0xff]
        %v827 = vld [vmem:[%s5 + $0x80] sm:$0xff]
        %v828 = vld [vmem:[%s5 + $0x88] sm:$0xff]
        %v829 = vld [vmem:[%s5 + $0x90] sm:$0xff]
        %v830 = vld [vmem:[%s5 + $0x98] sm:$0xff]
        %v831 = vld [vmem:[%s5 + $0xa0] sm:$0xff]
        %v832 = vld [vmem:[%s5 + $0xa8] sm:$0xff]
        %v833 = vld [vmem:[%s5 + $0xb0] sm:$0xff]
        %v834 = vld [vmem:[%s5 + $0xb8] sm:$0xff]
        %v835 = vld [vmem:[%s5 + $0xc0] sm:$0xff]
        %v836 = vld [vmem:[%s5 + $0xc8] sm:$0xff]
        %v837 = vld [vmem:[%s5 + $0xd0] sm:$0xff]
        %v838 = vld [vmem:[%s5 + $0xd8] sm:$0xff]
        %v839 = vld [vmem:[%s5 + $0xe0] sm:$0xff]
        %v840 = vld [vmem:[%s5 + $0xe8] sm:$0xff]
        %v841 = vld [vmem:[%s5 + $0xf0] sm:$0xff]
        %v842 = vld [vmem:[%s5 + $0xf8] sm:$0xff]
        %v843 = vld [vmem:[%s5 + $0x100] sm:$0xff]
        %v844 = vld [vmem:[%s5 + $0x108] sm:$0xff]
        %v845 = vld [vmem:[%s5 + $0x110] sm:$0xff]
        %v846 = vld [vmem:[%s5 + $0x118] sm:$0xff]
        %v847 = vld [vmem:[%s5 + $0x120] sm:$0xff]
        %v848 = vld [vmem:[%s5 + $0x128] sm:$0xff]
        %v849 = vld [vmem:[%s5 + $0x130] sm:$0xff]
        %v850 = vld [vmem:[%s5 + $0x138] sm:$0xff]
        %v851 = vld [vmem:[%s5 + $0x140] sm:$0xff]
        %v852 = vld [vmem:[%s5 + $0x148] sm:$0xff]
        %v853 = vld [vmem:[%s5 + $0x150] sm:$0xff]
        %v854 = vld [vmem:[%s5 + $0x158] sm:$0xff]
        %v855 = vld [vmem:[%s5 + $0x160] sm:$0xff]
        %v856 = vld [vmem:[%s5 + $0x168] sm:$0xff]
        %v857 = vld [vmem:[%s5 + $0x170] sm:$0xff]
        %v858 = vld [vmem:[%s5 + $0x178] sm:$0xff]
        %v859 = vld [vmem:[%s5 + $0x180] sm:$0xff]
        %v860 = vld [vmem:[%s5 + $0x188] sm:$0xff]
        %v861 = vld [vmem:[%s5 + $0x190] sm:$0xff]
        %v862 = vld [vmem:[%s5 + $0x198] sm:$0xff]
        %v863 = vld [vmem:[%s5 + $0x1a0] sm:$0xff]
        %v864 = vld [vmem:[%s5 + $0x1a8] sm:$0xff]
        %v865 = vld [vmem:[%s5 + $0x1b0] sm:$0xff]
        %v866 = vld [vmem:[%s5 + $0x1b8] sm:$0xff]
        %v867 = vld [vmem:[%s5 + $0x1c0] sm:$0xff]
        %v868 = vld [vmem:[%s5 + $0x1c8] sm:$0xff]
        %v869 = vld [vmem:[%s5 + $0x1d0] sm:$0xff]
        %v870 = vld [vmem:[%s5 + $0x1d8] sm:$0xff]
        %v871 = vld [vmem:[%s5 + $0x1e0] sm:$0xff]
        %v872 = vld [vmem:[%s5 + $0x1e8] sm:$0xff]
        %v873 = vld [vmem:[%s5 + $0x1f0] sm:$0xff]
        %v874 = vld [vmem:[%s5 + $0x1f8] sm:$0xff]
        %v875 = vld [vmem:[%s6] sm:$0x3]
        %v877 = vlaneseq
        %v878 = vshrl.u32 %v877, 7
        %v879 = vsub.s32 0, %v878
        %v880 = vrot.slane %v875, %v879
        %v881 = vlaneseq
        %v882 = vshrl.u32 %v881, 7
        %v883 = vsub.s32 1, %v882
        %v884 = vrot.slane %v875, %v883
        %887 = vmatprep.subr.mxu0 %v842
        %888 = vmatpush1.msra.mxu0 %v841
        %889 = vmatprep.subr.mxu0 %v840
        %890 = vmatpush1.msra.mxu0 %v839
        %891 = vmatprep.subr.mxu0 %v838
        %892 = vmatpush1.msra.mxu0 %v837
        %893 = vmatprep.subr.mxu0 %v836
        %894 = vmatpush1.msra.mxu0 %v835
        %895 = vmatprep.subr.mxu0 %v834
        %896 = vmatpush1.msra.mxu0 %v833
        %897 = vmatprep.subr.mxu0 %v832
        %898 = vmatpush1.msra.mxu0 %v831
        %899 = vmatprep.subr.mxu0 %v830
        %900 = vmatpush1.msra.mxu0 %v829
        %901 = vmatprep.subr.mxu0 %v828
        %902 = vmatpush1.msra.mxu0 %v827
        %903 = vmatprep.subr.mxu0 %v826
        %904 = vmatpush1.msra.mxu0 %v825
        %905 = vmatprep.subr.mxu0 %v824
        %906 = vmatpush1.msra.mxu0 %v823
        %907 = vmatprep.subr.mxu0 %v822
        %908 = vmatpush1.msra.mxu0 %v821
        %909 = vmatprep.subr.mxu0 %v820
        %910 = vmatpush1.msra.mxu0 %v819
        %911 = vmatprep.subr.mxu0 %v818
        %912 = vmatpush1.msra.mxu0 %v817
        %913 = vmatprep.subr.mxu0 %v816
        %914 = vmatpush1.msra.mxu0 %v815
        %915 = vmatprep.subr.mxu0 %v814
        %916 = vmatpush1.msra.mxu0 %v813
        %917 = vmatprep.subr.mxu0 %v812
        %918 = vmatpush1.msra.mxu0 %v811
        %919 = vmatprep.subr.mxu0 %v874
        %920 = vmatpush2.msra.mxu0 %v873
        %921 = vmatprep.subr.mxu0 %v872
        %922 = vmatpush2.msra.mxu0 %v871
        %923 = vmatprep.subr.mxu0 %v870
        %924 = vmatpush2.msra.mxu0 %v869
        %925 = vmatprep.subr.mxu0 %v868
        %926 = vmatpush2.msra.mxu0 %v867
        %927 = vmatprep.subr.mxu0 %v866
        %928 = vmatpush2.msra.mxu0 %v865
        %929 = vmatprep.subr.mxu0 %v864
        %930 = vmatpush2.msra.mxu0 %v863
        %931 = vmatprep.subr.mxu0 %v862
        %932 = vmatpush2.msra.mxu0 %v861
        %933 = vmatprep.subr.mxu0 %v860
        %934 = vmatpush2.msra.mxu0 %v859
        %935 = vmatprep.subr.mxu0 %v858
        %936 = vmatpush2.msra.mxu0 %v857
        %937 = vmatprep.subr.mxu0 %v856
        %938 = vmatpush2.msra.mxu0 %v855
        %939 = vmatprep.subr.mxu0 %v854
        %940 = vmatpush2.msra.mxu0 %v853
        %941 = vmatprep.subr.mxu0 %v852
        %942 = vmatpush2.msra.mxu0 %v851
        %943 = vmatprep.subr.mxu0 %v850
        %944 = vmatpush2.msra.mxu0 %v849
        %945 = vmatprep.subr.mxu0 %v848
        %946 = vmatpush2.msra.mxu0 %v847
        %947 = vmatprep.subr.mxu0 %v846
        %948 = vmatpush2.msra.mxu0 %v845
        %949 = vmatprep.subr.mxu0 %v844
        %950 = vmatpush2.msra.mxu0 %v843
        %951 = vmatprep.mubr.f32.mxu0 %v748
        %952 = vmatmul.mubr.f32.gmra.mxu0 %v747
        %v953 = vpop.f32.mrf.mxu0
        %v954 = vadd.f32 %v880, %v953
        %v955 = vpop.f32.mrf.mxu0
        %v956 = vadd.f32 %v884, %v955
        %957 = vmatprep.mubr.f32.mxu0 %v750
        %958 = vmatmul.mubr.f32.gmra.mxu0 %v749
        %v959 = vpop.f32.mrf.mxu0
        %v960 = vadd.f32 %v880, %v959
        %v961 = vpop.f32.mrf.mxu0
        %v962 = vadd.f32 %v884, %v961
        %963 = vmatprep.mubr.f32.mxu0 %v752
        %964 = vmatmul.mubr.f32.gmra.mxu0 %v751
        %v965 = vpop.f32.mrf.mxu0
        %v966 = vadd.f32 %v880, %v965
        %v967 = vpop.f32.mrf.mxu0
        %v968 = vadd.f32 %v884, %v967
        %969 = vmatprep.mubr.f32.mxu0 %v754
        %970 = vmatmul.mubr.f32.gmra.mxu0 %v753
        %v971 = vpop.f32.mrf.mxu0
        %v972 = vadd.f32 %v880, %v971
        %v973 = vpop.f32.mrf.mxu0
        %v974 = vadd.f32 %v884, %v973
        %975 = vmatprep.mubr.f32.mxu0 %v756
        %976 = vmatmul.mubr.f32.gmra.mxu0 %v755
        %v977 = vpop.f32.mrf.mxu0
        %v978 = vadd.f32 %v880, %v977
        %v979 = vpop.f32.mrf.mxu0
        %v980 = vadd.f32 %v884, %v979
        %981 = vmatprep.mubr.f32.mxu0 %v758
        %982 = vmatmul.mubr.f32.gmra.mxu0 %v757
        %v983 = vpop.f32.mrf.mxu0
        %v984 = vadd.f32 %v880, %v983
        %v985 = vpop.f32.mrf.mxu0
        %v986 = vadd.f32 %v884, %v985
        %987 = vmatprep.mubr.f32.mxu0 %v760
        %988 = vmatmul.mubr.f32.gmra.mxu0 %v759
        %v989 = vpop.f32.mrf.mxu0
        %v990 = vadd.f32 %v880, %v989
        %v991 = vpop.f32.mrf.mxu0
        %v992 = vadd.f32 %v884, %v991
        %993 = vmatprep.mubr.f32.mxu0 %v762
        %994 = vmatmul.mubr.f32.gmra.mxu0 %v761
        %v995 = vpop.f32.mrf.mxu0
        %v996 = vadd.f32 %v880, %v995
        %v997 = vpop.f32.mrf.mxu0
        %v998 = vadd.f32 %v884, %v997
        %999 = vmatprep.mubr.f32.mxu0 %v764
        %1000 = vmatmul.mubr.f32.gmra.mxu0 %v763
        %v1001 = vpop.f32.mrf.mxu0
        %v1002 = vadd.f32 %v880, %v1001
        %v1003 = vpop.f32.mrf.mxu0
        %v1004 = vadd.f32 %v884, %v1003
        %1005 = vmatprep.mubr.f32.mxu0 %v766
        %1006 = vmatmul.mubr.f32.gmra.mxu0 %v765
        %v1007 = vpop.f32.mrf.mxu0
        %v1008 = vadd.f32 %v880, %v1007
        %v1009 = vpop.f32.mrf.mxu0
        %v1010 = vadd.f32 %v884, %v1009
        %1011 = vmatprep.mubr.f32.mxu0 %v768
        %1012 = vmatmul.mubr.f32.gmra.mxu0 %v767
        %v1013 = vpop.f32.mrf.mxu0
        %v1014 = vadd.f32 %v880, %v1013
        %v1015 = vpop.f32.mrf.mxu0
        %v1016 = vadd.f32 %v884, %v1015
        %1017 = vmatprep.mubr.f32.mxu0 %v770
        %1018 = vmatmul.mubr.f32.gmra.mxu0 %v769
        %v1019 = vpop.f32.mrf.mxu0
        %v1020 = vadd.f32 %v880, %v1019
        %v1021 = vpop.f32.mrf.mxu0
        %v1022 = vadd.f32 %v884, %v1021
        %1023 = vmatprep.mubr.f32.mxu0 %v772
        %1024 = vmatmul.mubr.f32.gmra.mxu0 %v771
        %v1025 = vpop.f32.mrf.mxu0
        %v1026 = vadd.f32 %v880, %v1025
        %v1027 = vpop.f32.mrf.mxu0
        %v1028 = vadd.f32 %v884, %v1027
        %1029 = vmatprep.mubr.f32.mxu0 %v774
        %1030 = vmatmul.mubr.f32.gmra.mxu0 %v773
        %v1031 = vpop.f32.mrf.mxu0
        %v1032 = vadd.f32 %v880, %v1031
        %v1033 = vpop.f32.mrf.mxu0
        %v1034 = vadd.f32 %v884, %v1033
        %1035 = vmatprep.mubr.f32.mxu0 %v776
        %1036 = vmatmul.mubr.f32.gmra.mxu0 %v775
        %v1037 = vpop.f32.mrf.mxu0
        %v1038 = vadd.f32 %v880, %v1037
        %v1039 = vpop.f32.mrf.mxu0
        %v1040 = vadd.f32 %v884, %v1039
        %1041 = vmatprep.mubr.f32.mxu0 %v778
        %1042 = vmatmul.mubr.f32.gmra.mxu0 %v777
        %v1043 = vpop.f32.mrf.mxu0
        %v1044 = vadd.f32 %v880, %v1043
        %v1045 = vpop.f32.mrf.mxu0
        %v1046 = vadd.f32 %v884, %v1045
        %1047 = vmatprep.mubr.f32.mxu0 %v780
        %1048 = vmatmul.mubr.f32.gmra.mxu0 %v779
        %v1049 = vpop.f32.mrf.mxu0
        %v1050 = vadd.f32 %v880, %v1049
        %v1051 = vpop.f32.mrf.mxu0
        %v1052 = vadd.f32 %v884, %v1051
        %1053 = vmatprep.mubr.f32.mxu0 %v782
        %1054 = vmatmul.mubr.f32.gmra.mxu0 %v781
        %v1055 = vpop.f32.mrf.mxu0
        %v1056 = vadd.f32 %v880, %v1055
        %v1057 = vpop.f32.mrf.mxu0
        %v1058 = vadd.f32 %v884, %v1057
        %1059 = vmatprep.mubr.f32.mxu0 %v784
        %1060 = vmatmul.mubr.f32.gmra.mxu0 %v783
        %v1061 = vpop.f32.mrf.mxu0
        %v1062 = vadd.f32 %v880, %v1061
        %v1063 = vpop.f32.mrf.mxu0
        %v1064 = vadd.f32 %v884, %v1063
        %1065 = vmatprep.mubr.f32.mxu0 %v786
        %1066 = vmatmul.mubr.f32.gmra.mxu0 %v785
        %v1067 = vpop.f32.mrf.mxu0
        %v1068 = vadd.f32 %v880, %v1067
        %v1069 = vpop.f32.mrf.mxu0
        %v1070 = vadd.f32 %v884, %v1069
        %1071 = vmatprep.mubr.f32.mxu0 %v788
        %1072 = vmatmul.mubr.f32.gmra.mxu0 %v787
        %v1073 = vpop.f32.mrf.mxu0
        %v1074 = vadd.f32 %v880, %v1073
        %v1075 = vpop.f32.mrf.mxu0
        %v1076 = vadd.f32 %v884, %v1075
        %1077 = vmatprep.mubr.f32.mxu0 %v790
        %1078 = vmatmul.mubr.f32.gmra.mxu0 %v789
        %v1079 = vpop.f32.mrf.mxu0
        %v1080 = vadd.f32 %v880, %v1079
        %v1081 = vpop.f32.mrf.mxu0
        %v1082 = vadd.f32 %v884, %v1081
        %1083 = vmatprep.mubr.f32.mxu0 %v792
        %1084 = vmatmul.mubr.f32.gmra.mxu0 %v791
        %v1085 = vpop.f32.mrf.mxu0
        %v1086 = vadd.f32 %v880, %v1085
        %v1087 = vpop.f32.mrf.mxu0
        %v1088 = vadd.f32 %v884, %v1087
        %1089 = vmatprep.mubr.f32.mxu0 %v794
        %1090 = vmatmul.mubr.f32.gmra.mxu0 %v793
        %v1091 = vpop.f32.mrf.mxu0
        %v1092 = vadd.f32 %v880, %v1091
        %v1093 = vpop.f32.mrf.mxu0
        %v1094 = vadd.f32 %v884, %v1093
        %1095 = vmatprep.mubr.f32.mxu0 %v796
        %1096 = vmatmul.mubr.f32.gmra.mxu0 %v795
        %v1097 = vpop.f32.mrf.mxu0
        %v1098 = vadd.f32 %v880, %v1097
        %v1099 = vpop.f32.mrf.mxu0
        %v1100 = vadd.f32 %v884, %v1099
        %1101 = vmatprep.mubr.f32.mxu0 %v798
        %1102 = vmatmul.mubr.f32.gmra.mxu0 %v797
        %v1103 = vpop.f32.mrf.mxu0
        %v1104 = vadd.f32 %v880, %v1103
        %v1105 = vpop.f32.mrf.mxu0
        %v1106 = vadd.f32 %v884, %v1105
        %1107 = vmatprep.mubr.f32.mxu0 %v800
        %1108 = vmatmul.mubr.f32.gmra.mxu0 %v799
        %v1109 = vpop.f32.mrf.mxu0
        %v1110 = vadd.f32 %v880, %v1109
        %v1111 = vpop.f32.mrf.mxu0
        %v1112 = vadd.f32 %v884, %v1111
        %1113 = vmatprep.mubr.f32.mxu0 %v802
        %1114 = vmatmul.mubr.f32.gmra.mxu0 %v801
        %v1115 = vpop.f32.mrf.mxu0
        %v1116 = vadd.f32 %v880, %v1115
        %v1117 = vpop.f32.mrf.mxu0
        %v1118 = vadd.f32 %v884, %v1117
        %1119 = vmatprep.mubr.f32.mxu0 %v804
        %1120 = vmatmul.mubr.f32.gmra.mxu0 %v803
        %v1121 = vpop.f32.mrf.mxu0
        %v1122 = vadd.f32 %v880, %v1121
        %v1123 = vpop.f32.mrf.mxu0
        %v1124 = vadd.f32 %v884, %v1123
        %1125 = vmatprep.mubr.f32.mxu0 %v806
        %1126 = vmatmul.mubr.f32.gmra.mxu0 %v805
        %v1127 = vpop.f32.mrf.mxu0
        %v1128 = vadd.f32 %v880, %v1127
        %v1129 = vpop.f32.mrf.mxu0
        %v1130 = vadd.f32 %v884, %v1129
        %1131 = vmatprep.mubr.f32.mxu0 %v808
        %1132 = vmatmul.mubr.f32.gmra.mxu0 %v807
        %v1133 = vpop.f32.mrf.mxu0
        %v1134 = vadd.f32 %v880, %v1133
        %v1135 = vpop.f32.mrf.mxu0
        %v1136 = vadd.f32 %v884, %v1135
        %1137 = vmatprep.mubr.f32.mxu0 %v810
        %1138 = vmatmul.mubr.f32.gmra.mxu0 %v809
        %v1139 = vpop.f32.mrf.mxu0
        %v1140 = vadd.f32 %v880, %v1139
        %v1141 = vpop.f32.mrf.mxu0
        %v1142 = vadd.f32 %v884, %v1141
        %1143 = vdwg.mxu0
        %v1144 = vmax.f32 %v954, 0.0
        %v1145 = vmax.f32 %v956, 0.0
        %v1146 = vmax.f32 %v960, 0.0
        %v1147 = vmax.f32 %v962, 0.0
        %v1148 = vmax.f32 %v966, 0.0
        %v1149 = vmax.f32 %v968, 0.0
        %v1150 = vmax.f32 %v972, 0.0
        %v1151 = vmax.f32 %v974, 0.0
        %v1152 = vmax.f32 %v978, 0.0
        %v1153 = vmax.f32 %v980, 0.0
        %v1154 = vmax.f32 %v984, 0.0
        %v1155 = vmax.f32 %v986, 0.0
        %v1156 = vmax.f32 %v990, 0.0
        %v1157 = vmax.f32 %v992, 0.0
        %v1158 = vmax.f32 %v996, 0.0
        %v1159 = vmax.f32 %v998, 0.0
        %v1160 = vmax.f32 %v1002, 0.0
        %v1161 = vmax.f32 %v1004, 0.0
        %v1162 = vmax.f32 %v1008, 0.0
        %v1163 = vmax.f32 %v1010, 0.0
        %v1164 = vmax.f32 %v1014, 0.0
        %v1165 = vmax.f32 %v1016, 0.0
        %v1166 = vmax.f32 %v1020, 0.0
        %v1167 = vmax.f32 %v1022, 0.0
        %v1168 = vmax.f32 %v1026, 0.0
        %v1169 = vmax.f32 %v1028, 0.0
        %v1170 = vmax.f32 %v1032, 0.0
        %v1171 = vmax.f32 %v1034, 0.0
        %v1172 = vmax.f32 %v1038, 0.0
        %v1173 = vmax.f32 %v1040, 0.0
        %v1174 = vmax.f32 %v1044, 0.0
        %v1175 = vmax.f32 %v1046, 0.0
        %v1176 = vmax.f32 %v1050, 0.0
        %v1177 = vmax.f32 %v1052, 0.0
        %v1178 = vmax.f32 %v1056, 0.0
        %v1179 = vmax.f32 %v1058, 0.0
        %v1180 = vmax.f32 %v1062, 0.0
        %v1181 = vmax.f32 %v1064, 0.0
        %v1182 = vmax.f32 %v1068, 0.0
        %v1183 = vmax.f32 %v1070, 0.0
        %v1184 = vmax.f32 %v1074, 0.0
        %v1185 = vmax.f32 %v1076, 0.0
        %v1186 = vmax.f32 %v1080, 0.0
        %v1187 = vmax.f32 %v1082, 0.0
        %v1188 = vmax.f32 %v1086, 0.0
        %v1189 = vmax.f32 %v1088, 0.0
        %v1190 = vmax.f32 %v1092, 0.0
        %v1191 = vmax.f32 %v1094, 0.0
        %v1192 = vmax.f32 %v1098, 0.0
        %v1193 = vmax.f32 %v1100, 0.0
        %v1194 = vmax.f32 %v1104, 0.0
        %v1195 = vmax.f32 %v1106, 0.0
        %v1196 = vmax.f32 %v1110, 0.0
        %v1197 = vmax.f32 %v1112, 0.0
        %v1198 = vmax.f32 %v1116, 0.0
        %v1199 = vmax.f32 %v1118, 0.0
        %v1200 = vmax.f32 %v1122, 0.0
        %v1201 = vmax.f32 %v1124, 0.0
        %v1202 = vmax.f32 %v1128, 0.0
        %v1203 = vmax.f32 %v1130, 0.0
        %v1204 = vmax.f32 %v1134, 0.0
        %v1205 = vmax.f32 %v1136, 0.0
        %v1206 = vmax.f32 %v1140, 0.0
        %v1207 = vmax.f32 %v1142, 0.0
        %v1208 = vld [vmem:[%s7] sm:$0x3]
        %s1209 = sld [smem:[#allocation2 + $0x3]]
        %v1210 = vstv %s1209
        %v1212 = vlaneseq
        %v1213 = vshrl.u32 %v1212, 7
        %v1214 = vsub.s32 0, %v1213
        %v1215 = vrot.slane %v1208, %v1214
        %v1216 = vlaneseq
        %v1217 = vshrl.u32 %v1216, 7
        %v1218 = vsub.s32 1, %v1217
        %v1219 = vrot.slane %v1208, %v1218
        %1222 = vmatprep.subr.mxu0 %v1175
        %1223 = vmatpush1.xpose.msra.mxu0 %v1174
        %1224 = vmatprep.subr.mxu0 %v1173
        %1225 = vmatpush1.xpose.msra.mxu0 %v1172
        %1226 = vmatprep.subr.mxu0 %v1171
        %1227 = vmatpush1.xpose.msra.mxu0 %v1170
        %1228 = vmatprep.subr.mxu0 %v1169
        %1229 = vmatpush1.xpose.msra.mxu0 %v1168
        %1230 = vmatprep.subr.mxu0 %v1167
        %1231 = vmatpush1.xpose.msra.mxu0 %v1166
        %1232 = vmatprep.subr.mxu0 %v1165
        %1233 = vmatpush1.xpose.msra.mxu0 %v1164
        %1234 = vmatprep.subr.mxu0 %v1163
        %1235 = vmatpush1.xpose.msra.mxu0 %v1162
        %1236 = vmatprep.subr.mxu0 %v1161
        %1237 = vmatpush1.xpose.msra.mxu0 %v1160
        %1238 = vmatprep.subr.mxu0 %v1159
        %1239 = vmatpush1.xpose.msra.mxu0 %v1158
        %1240 = vmatprep.subr.mxu0 %v1157
        %1241 = vmatpush1.xpose.msra.mxu0 %v1156
        %1242 = vmatprep.subr.mxu0 %v1155
        %1243 = vmatpush1.xpose.msra.mxu0 %v1154
        %1244 = vmatprep.subr.mxu0 %v1153
        %1245 = vmatpush1.xpose.msra.mxu0 %v1152
        %1246 = vmatprep.subr.mxu0 %v1151
        %1247 = vmatpush1.xpose.msra.mxu0 %v1150
        %1248 = vmatprep.subr.mxu0 %v1149
        %1249 = vmatpush1.xpose.msra.mxu0 %v1148
        %1250 = vmatprep.subr.mxu0 %v1147
        %1251 = vmatpush1.xpose.msra.mxu0 %v1146
        %1252 = vmatprep.subr.mxu0 %v1145
        %1253 = vmatpush1.xpose.msra.mxu0 %v1144
        %1254 = vmatprep.subr.mxu0 %v1207
        %1255 = vmatpush2.xpose.msra.mxu0 %v1206
        %1256 = vmatprep.subr.mxu0 %v1205
        %1257 = vmatpush2.xpose.msra.mxu0 %v1204
        %1258 = vmatprep.subr.mxu0 %v1203
        %1259 = vmatpush2.xpose.msra.mxu0 %v1202
        %1260 = vmatprep.subr.mxu0 %v1201
        %1261 = vmatpush2.xpose.msra.mxu0 %v1200
        %1262 = vmatprep.subr.mxu0 %v1199
        %1263 = vmatpush2.xpose.msra.mxu0 %v1198
        %1264 = vmatprep.subr.mxu0 %v1197
        %1265 = vmatpush2.xpose.msra.mxu0 %v1196
        %1266 = vmatprep.subr.mxu0 %v1195
        %1267 = vmatpush2.xpose.msra.mxu0 %v1194
        %1268 = vmatprep.subr.mxu0 %v1193
        %1269 = vmatpush2.xpose.msra.mxu0 %v1192
        %1270 = vmatprep.subr.mxu0 %v1191
        %1271 = vmatpush2.xpose.msra.mxu0 %v1190
        %1272 = vmatprep.subr.mxu0 %v1189
        %1273 = vmatpush2.xpose.msra.mxu0 %v1188
        %1274 = vmatprep.subr.mxu0 %v1187
        %1275 = vmatpush2.xpose.msra.mxu0 %v1186
        %1276 = vmatprep.subr.mxu0 %v1185
        %1277 = vmatpush2.xpose.msra.mxu0 %v1184
        %1278 = vmatprep.subr.mxu0 %v1183
        %1279 = vmatpush2.xpose.msra.mxu0 %v1182
        %1280 = vmatprep.subr.mxu0 %v1181
        %1281 = vmatpush2.xpose.msra.mxu0 %v1180
        %1282 = vmatprep.subr.mxu0 %v1179
        %1283 = vmatpush2.xpose.msra.mxu0 %v1178
        %1284 = vmatprep.subr.mxu0 %v1177
        %1285 = vmatpush2.xpose.msra.mxu0 %v1176
        %1286 = vmatprep.mubr.f32.mxu0 %v1219
        %1287 = vmatmul.mubr.f32.gmra.mxu0 %v1215
        %v1288 = vpop.f32.mrf.mxu0
        %v1289 = vadd.f32 %v1210, %v1288
        %v1290 = vpop.f32.mrf.mxu0
        %v1291 = vadd.f32 %v1210, %v1290
        %1292 = vdwg.mxu0
        %s1293 = sld [smem:[#allocation2]]
        %s1294 = sld [smem:[#allocation2 + $0x1]]
        %s1295 = sld [smem:[#allocation2 + $0x2]]
        %v1296 = vld [vmem:[%s337] sm:$0x3]
        %v1297 = vstv %s1293
        %v1298 = vmul.f32 %v1297, %v1296
        %v1299 = vmax.f32 %v1298, 0.0
        %s1300 = smul.f32 %s1295, 0.5
        %vm1301 = vcmp.gt.f32.partialorder %v1299, 0.0
        %v1302 = vsel %vm1301, %v1299, 1.0
        %v1303 = vlog2.pop %v1302
        %v1304 = vmul.f32 %v1303, 0.6931472
        %v1305 = vstv %s1300
        %v1306 = vmul.f32 %v1305, %v1304
        %v1307 = vmul.f32 %v1306, 1.442695
        %v1308 = vpow.pop %v1307
        %p1309 = scmp.eq.f32.partialorder %s1295, 0.0
        %p1310 = scmp.gt.f32.partialorder %s1295, 0.0
        %s1311 = scalar_select %p1310, 0.0, inf
        %s1312 = scalar_select %p1309, 1.0, %s1311
        %v1313 = vstv %s1312
        %v1314 = vsel %vm1301, %v1308, %v1313
        %v1315 = vstv %s1294
        %v1316 = vmul.f32 %v1315, %v1314
        %v1319 = vcombine.low %v1289, %v1291
        %v1321 = vunpack.c.l.s4 1966171168
        %v1322 = vunpack.c.0.s8 %v1321
        %v1323 = vlaneseq
        %v1324 = vshrl.u32 %v1323, 7
        %v1325 = vsub.s32 %v1322, %v1324
        %v1326 = vrot.slane %v1319, %v1325
        %v1328 = vunpack.c.l.s4 1966171168
        %v1329 = vunpack.c.0.s8 %v1328
        %v1330 = vlaneseq
        %v1331 = vshrl.u32 %v1330, 7
        %v1332 = vsub.s32 %v1329, %v1331
        %v1333 = vrot.slane %v1326, %v1332
        %v1335 = vadd.f32 %v1316, %v1333
        %v1336 = vlaneseq
        %vm1337 = vcmp.ge.s32.totalorder %v1336, 0
        %vm1338 = vcmp.lt.s32.totalorder %v1336, 256
        %vm1339 = vmand %vm1337, %vm1338
        %1340 = vst.msk [vmem:[%s327] sm:$0x3] %vm1339, %v1335
        %s1341 = sand.u32 %s209, 1
        %s1342 = scalar_lea.sflag [#allocation3], %s1341
        %s1343 = sand.u32 %s209, 1
        %s1344 = smul.addr %s1343, 2
        %s1345 = scalar_lea.vmem [#allocation5], %s1344
        // Predicated region
        $region57: #{tpu_custom_call.1} parent=51 // pred_check
          %p1346 = pneg %p219
        $region58: #{tpu_custom_call.1} parent=51 // pred_check_branch
          %1348 = sbr.rel (%p1346) target = $region60
        $region59: #{tpu_custom_call.1} parent=51 // pred_region
          %s1349 = smul.u32 2, %s23
          %s1351 = ssub.s32 32, 32
          %1352 = vsyncadd %s1342, %s1351
          %s1353 = smul.addr %s1349, 16
          %s1354 = scalar_lea.hbm %s8, %s1353
          %s1356 = sshll.u32 %s1345, 4
          %s1357 = int_to_ptr.vmem [resolvable:$true] %s1356
          %1359 = dma.vmem_to_hbm [thread:$0]  %s1357, 32, %s1354, %s1342
        $region60: #{tpu_custom_call.1} parent=51 // pred_fallthru
          _
      $region52: #{tpu_custom_call.1} parent=5 // pred_fallthru
        _
      %p1360 = scmp.le.s32.totalorder 2, %s18
      // Predicated region
      $region61: #{tpu_custom_call.1} parent=5 // pred_check
        %p1361 = pneg %p1360
      $region62: #{tpu_custom_call.1} parent=5 // pred_check_branch
        %1363 = sbr.rel (%p1361) target = $region64
      $region63: #{tpu_custom_call.1} parent=5 // pred_region
        %s1364 = ssub.s32 %s18, 2
        // Predicated region
        $region65: #{tpu_custom_call.1} parent=63 // pred_check
          %p1365 = pneg %p225
        $region66: #{tpu_custom_call.1} parent=63 // pred_check_branch
          %1367 = sbr.rel (%p1365) target = $region68
        $region67: #{tpu_custom_call.1} parent=63 // pred_region
          %s1368 = sand.u32 %s210, 1
          %s1369 = scalar_lea.sflag [#allocation3], %s1368
          %s1370 = sand.u32 %s210, 1
          %s1371 = smul.addr %s1370, 2
          %s1372 = scalar_lea.vmem [#allocation5], %s1371
          %1373 = dma.done %s1369, 32
        $region68: #{tpu_custom_call.1} parent=63 // pred_fallthru
          _
      $region64: #{tpu_custom_call.1} parent=5 // pred_fallthru
        _
    $region6: #{tpu_custom_call.1} parent=1 // loop_footer
      %s22 = sadd.s32 1, %s18
    $region7: #{tpu_custom_call.1} parent=1 // loop_footer_branch
      %17 = sbr.rel target = $region3
    $region8: #{tpu_custom_call.1} parent=1 // loop_exit
      _
    %1374 = vsyncpa [#allocation3], 1
    %s1375 = scalar_lea.sflag [#allocation3], 1
    %1376 = vsyncpa %s1375, 1
    %1377 = vsyncpa [#allocation4], 1
    %s1378 = scalar_lea.sflag [#allocation4], 1
    %1379 = vsyncpa %s1378, 1

</llo_original>
